<compile_context>
chip_gen: v7x
topology: tpu7x:2x2x1
jax: 0.10.0
libtpu: 0.0.40
codegen_flags: <defaults>
</compile_context>

<pallas_src>
import functools
import math

import jax
import jax.numpy as jnp
from jax.experimental import pallas as pl
from jax.experimental.pallas import tpu as pltpu

LANE = 128           # class-axis padding granularity
MAX_C_TILE = 512     # class rows per grid step (per code-set half)


def _fused_caml_kernel(x_ref, uw_ref, out_ref, xt_ref, *, c_tile, b_blk):
    """One grid step = (one block of b_blk batch elements) x (one class tile).

    Refs:
      x_ref  : (b_blk, D, L)    raw document features (pre-tanh)
      uw_ref : (2*c_tile, D)    stacked [U_tile ; W_tile] for this class tile
      out_ref: (b_blk, c_tile)  un-biased logits, lane-dense, padded class axis
      xt_ref : (b_blk, D, L)    VMEM scratch caching tanh(x) across class tiles
    """
    # tanh(x) computed once per x block (class-tile axis is the inner grid axis,
    # so program_id(1) == 0 coincides with every new batch block).
    @pl.when(pl.program_id(1) == 0)
    def _():
        xt_ref[...] = jnp.tanh(x_ref[...]).astype(xt_ref.dtype)

    uw = uw_ref[...]                                    # resident for this step
    for b in range(b_blk):                              # static unroll (<= 8)
        xb = xt_ref[b]                                  # (D, L)
        # one stacked MXU matmul: attention scores and class projections together
        r = jnp.dot(uw, xb, preferred_element_type=jnp.float32)   # (2*c_tile, L)
        s = r[:c_tile]                                  # (c_tile, L)  U @ tanh(x)
        wx = r[c_tile:]                                 # (c_tile, L)  W @ tanh(x)
        # softmax over the sequence axis fused with the weighted sum:
        #   logit_c = sum_l softmax(s)_{c,l} * wx_{c,l}
        m = jnp.max(s, axis=-1, keepdims=True)
        p = jnp.exp(s - m)
        denom = jnp.sum(p, axis=-1)                     # (c_tile,)
        num = jnp.sum(p * wx, axis=-1)                  # (c_tile,)
        logits = num * pl.reciprocal(denom, approx=True)
        out_ref[b, :] = logits.astype(out_ref.dtype)


def caml_attention_forward(x, params):
    """Full CAMLAttention.forward: returns (logits_icd9, logits_icd10)."""
    B, D, L = x.shape
    u9, u10 = params["label_vec_icd9"], params["label_vec_icd10"]
    w9, w10 = params["w_icd9"], params["w_icd10"]
    b9, b10 = params["b_icd9"], params["b_icd10"]
    C9, C10 = u9.shape[0], u10.shape[0]
    C_tot = C9 + C10
    C_pad = pl.cdiv(C_tot, LANE) * LANE
    c_tile = math.gcd(C_pad, MAX_C_TILE)        # 128/256/512; always divides C_pad
    n_ct = C_pad // c_tile

    dt = x.dtype  # feed the MXU in the stored dtype (bf16-friendly; demo uses f32)
    u_all = (jnp.zeros((C_pad, D), dt)
             .at[:C9].set(u9.astype(dt))
             .at[C9:C_tot].set(u10.astype(dt)))
    w_all = (jnp.zeros((C_pad, D), dt)
             .at[:C9].set(w9.astype(dt))
             .at[C9:C_tot].set(w10.astype(dt)))
    # Group U and W per class tile: [U_tile0; W_tile0; U_tile1; W_tile1; ...]
    # so a single BlockSpec block of (2*c_tile, D) fetches both halves.
    uw = (jnp.stack([u_all, w_all], axis=0)             # (2, C_pad, D)
          .reshape(2, n_ct, c_tile, D)
          .transpose(1, 0, 2, 3)
          .reshape(2 * C_pad, D))
    bias = jnp.concatenate([b9, b10], axis=0)           # (C_tot,) added in wrapper

    # batch blocking: up to 8 batch elements per grid step
    b_blk = B if B <= 8 else 8
    B_pad = pl.cdiv(B, b_blk) * b_blk
    if B_pad != B:
        x = jnp.pad(x, ((0, B_pad - B), (0, 0), (0, 0)))

    out = pl.pallas_call(
        functools.partial(_fused_caml_kernel, c_tile=c_tile, b_blk=b_blk),
        out_shape=jax.ShapeDtypeStruct((B_pad, C_pad), jnp.float32),
        grid=(B_pad // b_blk, n_ct),
        in_specs=[
            pl.BlockSpec((b_blk, D, L), lambda bi, ci: (bi, 0, 0)),
            pl.BlockSpec((2 * c_tile, D), lambda bi, ci: (ci, 0)),
        ],
        out_specs=pl.BlockSpec((b_blk, c_tile), lambda bi, ci: (bi, ci)),
        scratch_shapes=[pltpu.VMEM((b_blk, D, L), dt)],   # tanh(x) cache
        compiler_params=pltpu.CompilerParams(
            dimension_semantics=("parallel", "arbitrary"),
            vmem_limit_bytes=32 * 1024 * 1024,
        ),
    )(x, uw)

    logits = out[:B, :C_tot] + bias[None, :].astype(jnp.float32)
    return logits[:, :C9], logits[:, C9:]


def _xavier_uniform(key, shape):
    fan_out, fan_in = shape
    bound = math.sqrt(6.0 / (fan_in + fan_out))
    return jax.random.uniform(key, shape, jnp.float32, -bound, bound)


def _reference_forward(x, params):
    """Pure-JAX reference matching the PyTorch semantics."""
    xt = jnp.tanh(x)

    def branch(u, w, b):
        att = jnp.einsum("cd,bdl->bcl", u, xt)
        att = jax.nn.softmax(att, axis=2)
        weighted = jnp.einsum("bcl,bdl->bcd", att, xt)
        return jnp.sum(w[None, :, :] * weighted, axis=2) + b[None, :]

    return (branch(params["label_vec_icd9"], params["w_icd9"], params["b_icd9"]),
            branch(params["label_vec_icd10"], params["w_icd10"], params["b_icd10"]))


if __name__ == "__main__":
    # small shapes consistent with the module's forward signature
    B, D, L = 2, 32, 16          # batch, input_size, seq_len
    C9, C10 = 8, 12              # num_classes_icd9, num_classes_icd10

    key = jax.random.PRNGKey(0)
    k_x, k_u9, k_u10, k_w9, k_w10, k_b9, k_b10 = jax.random.split(key, 7)

    x = jax.random.normal(k_x, (B, D, L), jnp.float32)

    params = {
        # synthetic GraphAttentionLayer outputs (label embedding matrices)
        "label_vec_icd9": jax.random.normal(k_u9, (C9, D), jnp.float32) * 0.1,
        "label_vec_icd10": jax.random.normal(k_u10, (C10, D), jnp.float32) * 0.1,
        # second_linear_* : xavier_uniform_ weights, default-uniform biases
        "w_icd9": _xavier_uniform(k_w9, (C9, D)),
        "w_icd10": _xavier_uniform(k_w10, (C10, D)),
        "b_icd9": jax.random.uniform(k_b9, (C9,), jnp.float32,
                                     -1.0 / math.sqrt(D), 1.0 / math.sqrt(D)),
        "b_icd10": jax.random.uniform(k_b10, (C10,), jnp.float32,
                                      -1.0 / math.sqrt(D), 1.0 / math.sqrt(D)),
    }

    logits9, logits10 = caml_attention_forward(x, params)
    jax.block_until_ready((logits9, logits10))

    ref9, ref10 = _reference_forward(x, params)
    assert logits9.shape == (B, C9) and logits10.shape == (B, C10)
    # tolerance accounts for the approximate (EUP) reciprocal in the softmax
    assert jnp.allclose(logits9, ref9, atol=2e-3, rtol=2e-3)
    assert jnp.allclose(logits10, ref10, atol=2e-3, rtol=2e-3)

    print("KERNEL_OK")
</pallas_src>

<mosaic_0001>
module attributes {stable_mosaic.version = 11 : i64} {
  func.func @_fused_caml_kernel(%arg0: i32, %arg1: i32, %arg2: memref<2x32x16xf32, #tpu.memory_space<vmem>>, %arg3: memref<256x32xf32, #tpu.memory_space<vmem>>, %arg4: memref<2x128xf32, #tpu.memory_space<vmem>>, %arg5: memref<2x32x16xf32, #tpu.memory_space<vmem>>) attributes {dimension_semantics = [#tpu.dimension_semantics<parallel>, #tpu.dimension_semantics<arbitrary>], iteration_bounds = array<i64: 1, 1>, scalar_prefetch = 0 : i64, scratch_operands = 1 : i64, tpu.core_type = #tpu.core_type<tc>, window_params = [{transform_indices = @transform_0, window_bounds = array<i64: 2, 32, 16>}, {transform_indices = @transform_1, window_bounds = array<i64: 256, 32>}, {transform_indices = @transform_2, window_bounds = array<i64: 2, 128>}]} {
    %c0_i32 = arith.constant 0 : i32
    %0 = arith.cmpi eq, %arg1, %c0_i32 : i32
    %1 = arith.extui %0 : i1 to i32
    %c0_i32_0 = arith.constant 0 : i32
    %2 = arith.cmpi ne, %1, %c0_i32_0 : i32
    scf.if %2 {
      %c0_18 = arith.constant 0 : index
      %c0_19 = arith.constant 0 : index
      %c0_20 = arith.constant 0 : index
      %40 = vector.load %arg2[%c0_18, %c0_19, %c0_20] : memref<2x32x16xf32, #tpu.memory_space<vmem>>, vector<2x32x16xf32>
      %41 = math.tanh %40 : vector<2x32x16xf32>
      %c0_21 = arith.constant 0 : index
      %c0_22 = arith.constant 0 : index
      %c0_23 = arith.constant 0 : index
      %42 = vector.load %arg5[%c0_21, %c0_22, %c0_23] : memref<2x32x16xf32, #tpu.memory_space<vmem>>, vector<2x32x16xf32>
      tpu.vector_store %arg5[%c0_21, %c0_22, %c0_23], %41 {strides = array<i32>} : memref<2x32x16xf32, #tpu.memory_space<vmem>>, vector<2x32x16xf32>,
    } else {
    }
    %c0 = arith.constant 0 : index
    %c0_1 = arith.constant 0 : index
    %3 = vector.load %arg3[%c0, %c0_1] : memref<256x32xf32, #tpu.memory_space<vmem>>, vector<256x32xf32>
    %c0_2 = arith.constant 0 : index
    %c0_3 = arith.constant 0 : index
    %c0_4 = arith.constant 0 : index
    %4 = vector.load %arg5[%c0_2, %c0_3, %c0_4] : memref<2x32x16xf32, #tpu.memory_space<vmem>>, vector<1x32x16xf32>
    %5 = vector.shape_cast %4 : vector<1x32x16xf32> to vector<32x16xf32>
    %cst = arith.constant dense<0.000000e+00> : vector<256x16xf32>
    %6 = tpu.matmul %3, %5, %cst {dimension_numbers = #tpu.dot_dimension_numbers<[1], [0], [0], [1], [0, 0, 1, 1], [], []>} : vector<256x32xf32>, vector<32x16xf32>, vector<256x16xf32> -> vector<256x16xf32>
    %7 = vector.extract_strided_slice %6 {offsets = [0, 0], sizes = [128, 16], strides = [1, 1]} : vector<256x16xf32> to vector<128x16xf32>
    %8 = vector.extract_strided_slice %6 {offsets = [128, 0], sizes = [128, 16], strides = [1, 1]} : vector<256x16xf32> to vector<128x16xf32>
    %cst_5 = arith.constant dense<0xFF800000> : vector<128xf32>
    %9 = vector.multi_reduction <maximumf>, %7, %cst_5 [1] : vector<128x16xf32> to vector<128xf32>
    %10 = vector.shape_cast %9 : vector<128xf32> to vector<128x1xf32>
    %11 = vector.broadcast %10 : vector<128x1xf32> to vector<128x16xf32>
    %12 = arith.subf %7, %11 : vector<128x16xf32>
    %13 = math.exp %12 : vector<128x16xf32>
    %cst_6 = arith.constant dense<0.000000e+00> : vector<128xf32>
    %14 = vector.multi_reduction <add>, %13, %cst_6 [1] : vector<128x16xf32> to vector<128xf32>
    %15 = arith.mulf %13, %8 : vector<128x16xf32>
    %cst_7 = arith.constant dense<0.000000e+00> : vector<128xf32>
    %16 = vector.multi_reduction <add>, %15, %cst_7 [1] : vector<128x16xf32> to vector<128xf32>
    %17 = tpu.reciprocal %14 {approx = true} : vector<128xf32> -> vector<128xf32>
    %18 = arith.mulf %16, %17 : vector<128xf32>
    %c0_8 = arith.constant 0 : index
    %c0_9 = arith.constant 0 : index
    %19 = vector.load %arg4[%c0_8, %c0_9] : memref<2x128xf32, #tpu.memory_space<vmem>>, vector<1x128xf32>
    %20 = vector.shape_cast %19 : vector<1x128xf32> to vector<128xf32>
    %21 = vector.shape_cast %18 : vector<128xf32> to vector<1x128xf32>
    tpu.vector_store %arg4[%c0_8, %c0_9], %21 {strides = array<i32>} : memref<2x128xf32, #tpu.memory_space<vmem>>, vector<1x128xf32>,
    %c1 = arith.constant 1 : index
    %c0_10 = arith.constant 0 : index
    %c0_11 = arith.constant 0 : index
    %22 = vector.load %arg5[%c1, %c0_10, %c0_11] : memref<2x32x16xf32, #tpu.memory_space<vmem>>, vector<1x32x16xf32>
    %23 = vector.shape_cast %22 : vector<1x32x16xf32> to vector<32x16xf32>
    %cst_12 = arith.constant dense<0.000000e+00> : vector<256x16xf32>
    %24 = tpu.matmul %3, %23, %cst_12 {dimension_numbers = #tpu.dot_dimension_numbers<[1], [0], [0], [1], [0, 0, 1, 1], [], []>} : vector<256x32xf32>, vector<32x16xf32>, vector<256x16xf32> -> vector<256x16xf32>
    %25 = vector.extract_strided_slice %24 {offsets = [0, 0], sizes = [128, 16], strides = [1, 1]} : vector<256x16xf32> to vector<128x16xf32>
    %26 = vector.extract_strided_slice %24 {offsets = [128, 0], sizes = [128, 16], strides = [1, 1]} : vector<256x16xf32> to vector<128x16xf32>
    %cst_13 = arith.constant dense<0xFF800000> : vector<128xf32>
    %27 = vector.multi_reduction <maximumf>, %25, %cst_13 [1] : vector<128x16xf32> to vector<128xf32>
    %28 = vector.shape_cast %27 : vector<128xf32> to vector<128x1xf32>
    %29 = vector.broadcast %28 : vector<128x1xf32> to vector<128x16xf32>
    %30 = arith.subf %25, %29 : vector<128x16xf32>
    %31 = math.exp %30 : vector<128x16xf32>
    %cst_14 = arith.constant dense<0.000000e+00> : vector<128xf32>
    %32 = vector.multi_reduction <add>, %31, %cst_14 [1] : vector<128x16xf32> to vector<128xf32>
    %33 = arith.mulf %31, %26 : vector<128x16xf32>
    %cst_15 = arith.constant dense<0.000000e+00> : vector<128xf32>
    %34 = vector.multi_reduction <add>, %33, %cst_15 [1] : vector<128x16xf32> to vector<128xf32>
    %35 = tpu.reciprocal %32 {approx = true} : vector<128xf32> -> vector<128xf32>
    %36 = arith.mulf %34, %35 : vector<128xf32>
    %c1_16 = arith.constant 1 : index
    %c0_17 = arith.constant 0 : index
    %37 = vector.load %arg4[%c1_16, %c0_17] : memref<2x128xf32, #tpu.memory_space<vmem>>, vector<1x128xf32>
    %38 = vector.shape_cast %37 : vector<1x128xf32> to vector<128xf32>
    %39 = vector.shape_cast %36 : vector<128xf32> to vector<1x128xf32>
    tpu.vector_store %arg4[%c1_16, %c0_17], %39 {strides = array<i32>} : memref<2x128xf32, #tpu.memory_space<vmem>>, vector<1x128xf32>,
    return
  }
  func.func @transform_0(%arg0: i32, %arg1: i32) -> (i32, i32, i32) {
    %c0_i32 = arith.constant 0 : i32
    %c0_i32_0 = arith.constant 0 : i32
    %c0_i32_1 = arith.constant 0 : i32
    return %arg0, %c0_i32, %c0_i32_0 : i32, i32, i32
  }
  func.func @transform_1(%arg0: i32, %arg1: i32) -> (i32, i32) {
    %c0_i32 = arith.constant 0 : i32
    %c0_i32_0 = arith.constant 0 : i32
    return %arg1, %c0_i32 : i32, i32
  }
  func.func @transform_2(%arg0: i32, %arg1: i32) -> (i32, i32) {
    %c0_i32 = arith.constant 0 : i32
    return %arg0, %arg1 : i32, i32
  }
}

</mosaic_0001>

<llo_original>
// kernel: tpu_custom_call.1
$region0: #{tpu_custom_call.1}
  #allocation0 [shape = 'u32[]', space=smem, size = 0x4, offset = 0x4, fixed_abs, tag = 'smem constant byte address 0x4 - core index']
  #allocation1 [shape = 'u32[144,128]{1,0:T(1,128)}', space=vmem, size = 0x12000, scoped, tag = 'internal scratch']
  #allocation2 [shape = 'f32[2,32,16]{2,1,0:T(8,128)}', space=vmem, size = 0x8000, scoped, tag = 'scratch operand']
  %s0 = inlined_call_operand.vmem [shape: f32[2,32,16], index: 0, kind: input, shape index: {}]
  %s1 = inlined_call_operand.vmem [shape: f32[256,32], index: 1, kind: input, shape index: {}]
  %s2 = inlined_call_operand.hbm [shape: f32[2,128], index: 2, kind: output, shape index: {}]
  %s3 = sld [smem:[#allocation0]]
  $region22: #{tpu_custom_call.1} parent=0
    _
  %s5 = ssub.s32 1, %s3
  %s6 = scalar_select 0, %s5, %s3
  $region1: #{tpu_custom_call.1} parent=0
    #allocation3 [shape = 'u8[1024]{0}', space=vmem, size = 0x400, scoped, tag = 'output window, operand 0, single buffered']
    #allocation4 [shape = 's32[1]{0}', space=sflag, size = 0x4, scoped, tag = 'scoped memory for tpu_custom_call.1']
    %7 = vsyncpa [#allocation4], 0
    // Predicated region
    $region2: #{tpu_custom_call.1} parent=1 // pred_check
      _
    $region3: #{tpu_custom_call.1} parent=1 // pred_check_branch
      %9 = sbr.rel (0) target = $region5
    $region4: #{tpu_custom_call.1} parent=1 // pred_region
      _
    $region5: #{tpu_custom_call.1} parent=1 // pred_fallthru
      _
    // Predicated region
    $region6: #{tpu_custom_call.1} parent=1 // pred_check
      _
    $region7: #{tpu_custom_call.1} parent=1 // pred_check_branch
      %11 = sbr.rel (0) target = $region9
    $region8: #{tpu_custom_call.1} parent=1 // pred_region
      _
    $region9: #{tpu_custom_call.1} parent=1 // pred_fallthru
      _
    %p12 = scmp.eq.s32.totalorder 0, 0
    // Predicated region
    $region10: #{tpu_custom_call.1} parent=1 // pred_check
      %p13 = pneg %p12
    $region11: #{tpu_custom_call.1} parent=1 // pred_check_branch
      %15 = sbr.rel (%p13) target = $region13
    $region12: #{tpu_custom_call.1} parent=1 // pred_region
      %v16 = vld [vmem:[%s0] sm:$0xff]
      %v17 = vld [vmem:[%s0 + $0x8] sm:$0xff]
      %v18 = vld [vmem:[%s0 + $0x10] sm:$0xff]
      %v19 = vld [vmem:[%s0 + $0x18] sm:$0xff]
      %v20 = vld [vmem:[%s0 + $0x20] sm:$0xff]
      %v21 = vld [vmem:[%s0 + $0x28] sm:$0xff]
      %v22 = vld [vmem:[%s0 + $0x30] sm:$0xff]
      %v23 = vld [vmem:[%s0 + $0x38] sm:$0xff]
      %v24 = vtanh.pop %v16
      %v25 = vtanh.pop %v17
      %v26 = vtanh.pop %v18
      %v27 = vtanh.pop %v19
      %v28 = vtanh.pop %v20
      %v29 = vtanh.pop %v21
      %v30 = vtanh.pop %v22
      %v31 = vtanh.pop %v23
      %vm32 = vcmask 130048
      %33 = vst.msk [vmem:[#allocation2] sm:$0xff] %vm32, %v24
      %34 = vst.msk [vmem:[#allocation2 + $0x8] sm:$0xff] %vm32, %v25
      %35 = vst.msk [vmem:[#allocation2 + $0x10] sm:$0xff] %vm32, %v26
      %36 = vst.msk [vmem:[#allocation2 + $0x18] sm:$0xff] %vm32, %v27
      %37 = vst.msk [vmem:[#allocation2 + $0x20] sm:$0xff] %vm32, %v28
      %38 = vst.msk [vmem:[#allocation2 + $0x28] sm:$0xff] %vm32, %v29
      %39 = vst.msk [vmem:[#allocation2 + $0x30] sm:$0xff] %vm32, %v30
      %40 = vst.msk [vmem:[#allocation2 + $0x38] sm:$0xff] %vm32, %v31
    $region13: #{tpu_custom_call.1} parent=1 // pred_fallthru
      _
    %v41 = vld [vmem:[%s1] sm:$0xff]
    %v42 = vld [vmem:[%s1 + $0x8] sm:$0xff]
    %v43 = vld [vmem:[%s1 + $0x10] sm:$0xff]
    %v44 = vld [vmem:[%s1 + $0x18] sm:$0xff]
    %v45 = vld [vmem:[%s1 + $0x20] sm:$0xff]
    %v46 = vld [vmem:[%s1 + $0x28] sm:$0xff]
    %v47 = vld [vmem:[%s1 + $0x30] sm:$0xff]
    %v48 = vld [vmem:[%s1 + $0x38] sm:$0xff]
    %v49 = vld [vmem:[%s1 + $0x40] sm:$0xff]
    %v50 = vld [vmem:[%s1 + $0x48] sm:$0xff]
    %v51 = vld [vmem:[%s1 + $0x50] sm:$0xff]
    %v52 = vld [vmem:[%s1 + $0x58] sm:$0xff]
    %v53 = vld [vmem:[%s1 + $0x60] sm:$0xff]
    %v54 = vld [vmem:[%s1 + $0x68] sm:$0xff]
    %v55 = vld [vmem:[%s1 + $0x70] sm:$0xff]
    %v56 = vld [vmem:[%s1 + $0x78] sm:$0xff]
    %v57 = vld [vmem:[%s1 + $0x80] sm:$0xff]
    %v58 = vld [vmem:[%s1 + $0x88] sm:$0xff]
    %v59 = vld [vmem:[%s1 + $0x90] sm:$0xff]
    %v60 = vld [vmem:[%s1 + $0x98] sm:$0xff]
    %v61 = vld [vmem:[%s1 + $0xa0] sm:$0xff]
    %v62 = vld [vmem:[%s1 + $0xa8] sm:$0xff]
    %v63 = vld [vmem:[%s1 + $0xb0] sm:$0xff]
    %v64 = vld [vmem:[%s1 + $0xb8] sm:$0xff]
    %v65 = vld [vmem:[%s1 + $0xc0] sm:$0xff]
    %v66 = vld [vmem:[%s1 + $0xc8] sm:$0xff]
    %v67 = vld [vmem:[%s1 + $0xd0] sm:$0xff]
    %v68 = vld [vmem:[%s1 + $0xd8] sm:$0xff]
    %v69 = vld [vmem:[%s1 + $0xe0] sm:$0xff]
    %v70 = vld [vmem:[%s1 + $0xe8] sm:$0xff]
    %v71 = vld [vmem:[%s1 + $0xf0] sm:$0xff]
    %v72 = vld [vmem:[%s1 + $0xf8] sm:$0xff]
    %v73 = vld [vmem:[#allocation2] sm:$0xff]
    %v74 = vld [vmem:[#allocation2 + $0x8] sm:$0xff]
    %v75 = vld [vmem:[#allocation2 + $0x10] sm:$0xff]
    %v76 = vld [vmem:[#allocation2 + $0x18] sm:$0xff]
    %vm77 = vcmask 261120
    %v79 = vsel %vm77, %v41, 0
    %v82 = vsel %vm77, %v42, 0
    %v85 = vsel %vm77, %v43, 0
    %v88 = vsel %vm77, %v44, 0
    %v91 = vsel %vm77, %v45, 0
    %v94 = vsel %vm77, %v46, 0
    %v97 = vsel %vm77, %v47, 0
    %v100 = vsel %vm77, %v48, 0
    %v103 = vsel %vm77, %v49, 0
    %v106 = vsel %vm77, %v50, 0
    %v109 = vsel %vm77, %v51, 0
    %v112 = vsel %vm77, %v52, 0
    %v115 = vsel %vm77, %v53, 0
    %v118 = vsel %vm77, %v54, 0
    %v121 = vsel %vm77, %v55, 0
    %v124 = vsel %vm77, %v56, 0
    %v127 = vsel %vm77, %v57, 0
    %v130 = vsel %vm77, %v58, 0
    %v133 = vsel %vm77, %v59, 0
    %v136 = vsel %vm77, %v60, 0
    %v139 = vsel %vm77, %v61, 0
    %v142 = vsel %vm77, %v62, 0
    %v145 = vsel %vm77, %v63, 0
    %v148 = vsel %vm77, %v64, 0
    %v151 = vsel %vm77, %v65, 0
    %v154 = vsel %vm77, %v66, 0
    %v157 = vsel %vm77, %v67, 0
    %v160 = vsel %vm77, %v68, 0
    %v163 = vsel %vm77, %v69, 0
    %v166 = vsel %vm77, %v70, 0
    %v169 = vsel %vm77, %v71, 0
    %v172 = vsel %vm77, %v72, 0
    %174 = vmatprep.subr.mxu0 0.0
    %175 = vmatpush1.msra.mxu0 %v73
    %176 = vmatprep.subr.mxu0 0.0
    %177 = vmatpush1.msra.mxu0 %v74
    %178 = vmatprep.subr.mxu0 0.0
    %179 = vmatpush1.msra.mxu0 %v75
    %180 = vmatprep.subr.mxu0 0.0
    %181 = vmatpush1.msra.mxu0 %v76
    %182 = vmatprep.subr.mxu0 0.0
    %183 = vmatpush1.msra.mxu0 0.0
    %184 = vmatprep.subr.mxu0 0.0
    %185 = vmatpush1.msra.mxu0 0.0
    %186 = vmatprep.subr.mxu0 0.0
    %187 = vmatpush1.msra.mxu0 0.0
    %188 = vmatprep.subr.mxu0 0.0
    %189 = vmatpush1.msra.mxu0 0.0
    %190 = vmatprep.subr.mxu0 0.0
    %191 = vmatpush1.msra.mxu0 0.0
    %192 = vmatprep.subr.mxu0 0.0
    %193 = vmatpush1.msra.mxu0 0.0
    %194 = vmatprep.subr.mxu0 0.0
    %195 = vmatpush1.msra.mxu0 0.0
    %196 = vmatprep.subr.mxu0 0.0
    %197 = vmatpush1.msra.mxu0 0.0
    %198 = vmatprep.subr.mxu0 0.0
    %199 = vmatpush1.msra.mxu0 0.0
    %200 = vmatprep.subr.mxu0 0.0
    %201 = vmatpush1.msra.mxu0 0.0
    %202 = vmatprep.subr.mxu0 0.0
    %203 = vmatpush1.msra.mxu0 0.0
    %204 = vmatprep.subr.mxu0 0.0
    %205 = vmatpush1.msra.mxu0 0.0
    %206 = vmatprep.subr.mxu0 0.0
    %207 = vmatpush1.msra.mxu0 0.0
    %208 = vmatprep.subr.mxu0 0.0
    %209 = vmatpush1.msra.mxu0 0.0
    %210 = vmatprep.subr.mxu0 0.0
    %211 = vmatpush1.msra.mxu0 0.0
    %212 = vmatprep.subr.mxu0 0.0
    %213 = vmatpush1.msra.mxu0 0.0
    %214 = vmatprep.subr.mxu0 0.0
    %215 = vmatpush1.msra.mxu0 0.0
    %216 = vmatprep.subr.mxu0 0.0
    %217 = vmatpush1.msra.mxu0 0.0
    %218 = vmatprep.subr.mxu0 0.0
    %219 = vmatpush1.msra.mxu0 0.0
    %220 = vmatprep.subr.mxu0 0.0
    %221 = vmatpush1.msra.mxu0 0.0
    %222 = vmatprep.subr.mxu0 0.0
    %223 = vmatpush1.msra.mxu0 0.0
    %224 = vmatprep.subr.mxu0 0.0
    %225 = vmatpush1.msra.mxu0 0.0
    %226 = vmatprep.subr.mxu0 0.0
    %227 = vmatpush1.msra.mxu0 0.0
    %228 = vmatprep.subr.mxu0 0.0
    %229 = vmatpush1.msra.mxu0 0.0
    %230 = vmatprep.subr.mxu0 0.0
    %231 = vmatpush1.msra.mxu0 0.0
    %232 = vmatprep.subr.mxu0 0.0
    %233 = vmatpush1.msra.mxu0 0.0
    %234 = vmatprep.subr.mxu0 0.0
    %235 = vmatpush1.msra.mxu0 0.0
    %236 = vmatprep.subr.mxu0 0.0
    %237 = vmatpush1.msra.mxu0 0.0
    %238 = vmatprep.mubr.f32.mxu0 0.0
    %239 = vmatmul.mubr.f32.gmra.mrb[0].mxu0 %v79
    %v240 = vpop.f32.mrb[0].mxu0
    %v241 = vadd.f32 0.0, %v240
    %v242 = vpop.f32.mrb[0].mxu0
    %243 = vmatprep.mubr.f32.mxu0 0.0
    %244 = vmatmul.mubr.f32.gmra.mrb[0].mxu0 %v82
    %v245 = vpop.f32.mrb[0].mxu0
    %v246 = vadd.f32 0.0, %v245
    %v247 = vpop.f32.mrb[0].mxu0
    %248 = vmatprep.mubr.f32.mxu0 0.0
    %249 = vmatmul.mubr.f32.gmra.mrb[0].mxu0 %v85
    %v250 = vpop.f32.mrb[0].mxu0
    %v251 = vadd.f32 0.0, %v250
    %v252 = vpop.f32.mrb[0].mxu0
    %253 = vmatprep.mubr.f32.mxu0 0.0
    %254 = vmatmul.mubr.f32.gmra.mrb[0].mxu0 %v88
    %v255 = vpop.f32.mrb[0].mxu0
    %v256 = vadd.f32 0.0, %v255
    %v257 = vpop.f32.mrb[0].mxu0
    %258 = vmatprep.mubr.f32.mxu0 0.0
    %259 = vmatmul.mubr.f32.gmra.mrb[0].mxu0 %v91
    %v260 = vpop.f32.mrb[0].mxu0
    %v261 = vadd.f32 0.0, %v260
    %v262 = vpop.f32.mrb[0].mxu0
    %263 = vmatprep.mubr.f32.mxu0 0.0
    %264 = vmatmul.mubr.f32.gmra.mrb[0].mxu0 %v94
    %v265 = vpop.f32.mrb[0].mxu0
    %v266 = vadd.f32 0.0, %v265
    %v267 = vpop.f32.mrb[0].mxu0
    %268 = vmatprep.mubr.f32.mxu0 0.0
    %269 = vmatmul.mubr.f32.gmra.mrb[0].mxu0 %v97
    %v270 = vpop.f32.mrb[0].mxu0
    %v271 = vadd.f32 0.0, %v270
    %v272 = vpop.f32.mrb[0].mxu0
    %273 = vmatprep.mubr.f32.mxu0 0.0
    %274 = vmatmul.mubr.f32.gmra.mrb[0].mxu0 %v100
    %v275 = vpop.f32.mrb[0].mxu0
    %v276 = vadd.f32 0.0, %v275
    %v277 = vpop.f32.mrb[0].mxu0
    %278 = vmatprep.mubr.f32.mxu0 0.0
    %279 = vmatmul.mubr.f32.gmra.mrb[0].mxu0 %v103
    %v280 = vpop.f32.mrb[0].mxu0
    %v281 = vadd.f32 0.0, %v280
    %v282 = vpop.f32.mrb[0].mxu0
    %283 = vmatprep.mubr.f32.mxu0 0.0
    %284 = vmatmul.mubr.f32.gmra.mrb[0].mxu0 %v106
    %v285 = vpop.f32.mrb[0].mxu0
    %v286 = vadd.f32 0.0, %v285
    %v287 = vpop.f32.mrb[0].mxu0
    %288 = vmatprep.mubr.f32.mxu0 0.0
    %289 = vmatmul.mubr.f32.gmra.mrb[0].mxu0 %v109
    %v290 = vpop.f32.mrb[0].mxu0
    %v291 = vadd.f32 0.0, %v290
    %v292 = vpop.f32.mrb[0].mxu0
    %293 = vmatprep.mubr.f32.mxu0 0.0
    %294 = vmatmul.mubr.f32.gmra.mrb[0].mxu0 %v112
    %v295 = vpop.f32.mrb[0].mxu0
    %v296 = vadd.f32 0.0, %v295
    %v297 = vpop.f32.mrb[0].mxu0
    %298 = vmatprep.mubr.f32.mxu0 0.0
    %299 = vmatmul.mubr.f32.gmra.mrb[0].mxu0 %v115
    %v300 = vpop.f32.mrb[0].mxu0
    %v301 = vadd.f32 0.0, %v300
    %v302 = vpop.f32.mrb[0].mxu0
    %303 = vmatprep.mubr.f32.mxu0 0.0
    %304 = vmatmul.mubr.f32.gmra.mrb[0].mxu0 %v118
    %v305 = vpop.f32.mrb[0].mxu0
    %v306 = vadd.f32 0.0, %v305
    %v307 = vpop.f32.mrb[0].mxu0
    %308 = vmatprep.mubr.f32.mxu0 0.0
    %309 = vmatmul.mubr.f32.gmra.mrb[0].mxu0 %v121
    %v310 = vpop.f32.mrb[0].mxu0
    %v311 = vadd.f32 0.0, %v310
    %v312 = vpop.f32.mrb[0].mxu0
    %313 = vmatprep.mubr.f32.mxu0 0.0
    %314 = vmatmul.mubr.f32.gmra.mrb[0].mxu0 %v124
    %v315 = vpop.f32.mrb[0].mxu0
    %v316 = vadd.f32 0.0, %v315
    %v317 = vpop.f32.mrb[0].mxu0
    %318 = vmatprep.mubr.f32.mxu0 0.0
    %319 = vmatmul.mubr.f32.gmra.mrb[0].mxu0 %v127
    %v320 = vpop.f32.mrb[0].mxu0
    %v321 = vadd.f32 0.0, %v320
    %v322 = vpop.f32.mrb[0].mxu0
    %323 = vmatprep.mubr.f32.mxu0 0.0
    %324 = vmatmul.mubr.f32.gmra.mrb[0].mxu0 %v130
    %v325 = vpop.f32.mrb[0].mxu0
    %v326 = vadd.f32 0.0, %v325
    %v327 = vpop.f32.mrb[0].mxu0
    %328 = vmatprep.mubr.f32.mxu0 0.0
    %329 = vmatmul.mubr.f32.gmra.mrb[0].mxu0 %v133
    %v330 = vpop.f32.mrb[0].mxu0
    %v331 = vadd.f32 0.0, %v330
    %v332 = vpop.f32.mrb[0].mxu0
    %333 = vmatprep.mubr.f32.mxu0 0.0
    %334 = vmatmul.mubr.f32.gmra.mrb[0].mxu0 %v136
    %v335 = vpop.f32.mrb[0].mxu0
    %v336 = vadd.f32 0.0, %v335
    %v337 = vpop.f32.mrb[0].mxu0
    %338 = vmatprep.mubr.f32.mxu0 0.0
    %339 = vmatmul.mubr.f32.gmra.mrb[0].mxu0 %v139
    %v340 = vpop.f32.mrb[0].mxu0
    %v341 = vadd.f32 0.0, %v340
    %v342 = vpop.f32.mrb[0].mxu0
    %343 = vmatprep.mubr.f32.mxu0 0.0
    %344 = vmatmul.mubr.f32.gmra.mrb[0].mxu0 %v142
    %v345 = vpop.f32.mrb[0].mxu0
    %v346 = vadd.f32 0.0, %v345
    %v347 = vpop.f32.mrb[0].mxu0
    %348 = vmatprep.mubr.f32.mxu0 0.0
    %349 = vmatmul.mubr.f32.gmra.mrb[0].mxu0 %v145
    %v350 = vpop.f32.mrb[0].mxu0
    %v351 = vadd.f32 0.0, %v350
    %v352 = vpop.f32.mrb[0].mxu0
    %353 = vmatprep.mubr.f32.mxu0 0.0
    %354 = vmatmul.mubr.f32.gmra.mrb[0].mxu0 %v148
    %v355 = vpop.f32.mrb[0].mxu0
    %v356 = vadd.f32 0.0, %v355
    %v357 = vpop.f32.mrb[0].mxu0
    %358 = vmatprep.mubr.f32.mxu0 0.0
    %359 = vmatmul.mubr.f32.gmra.mrb[0].mxu0 %v151
    %v360 = vpop.f32.mrb[0].mxu0
    %v361 = vadd.f32 0.0, %v360
    %v362 = vpop.f32.mrb[0].mxu0
    %363 = vmatprep.mubr.f32.mxu0 0.0
    %364 = vmatmul.mubr.f32.gmra.mrb[0].mxu0 %v154
    %v365 = vpop.f32.mrb[0].mxu0
    %v366 = vadd.f32 0.0, %v365
    %v367 = vpop.f32.mrb[0].mxu0
    %368 = vmatprep.mubr.f32.mxu0 0.0
    %369 = vmatmul.mubr.f32.gmra.mrb[0].mxu0 %v157
    %v370 = vpop.f32.mrb[0].mxu0
    %v371 = vadd.f32 0.0, %v370
    %v372 = vpop.f32.mrb[0].mxu0
    %373 = vmatprep.mubr.f32.mxu0 0.0
    %374 = vmatmul.mubr.f32.gmra.mrb[0].mxu0 %v160
    %v375 = vpop.f32.mrb[0].mxu0
    %v376 = vadd.f32 0.0, %v375
    %v377 = vpop.f32.mrb[0].mxu0
    %378 = vmatprep.mubr.f32.mxu0 0.0
    %379 = vmatmul.mubr.f32.gmra.mrb[0].mxu0 %v163
    %v380 = vpop.f32.mrb[0].mxu0
    %v381 = vadd.f32 0.0, %v380
    %v382 = vpop.f32.mrb[0].mxu0
    %383 = vmatprep.mubr.f32.mxu0 0.0
    %384 = vmatmul.mubr.f32.gmra.mrb[0].mxu0 %v166
    %v385 = vpop.f32.mrb[0].mxu0
    %v386 = vadd.f32 0.0, %v385
    %v387 = vpop.f32.mrb[0].mxu0
    %388 = vmatprep.mubr.f32.mxu0 0.0
    %389 = vmatmul.mubr.f32.gmra.mrb[0].mxu0 %v169
    %v390 = vpop.f32.mrb[0].mxu0
    %v391 = vadd.f32 0.0, %v390
    %v392 = vpop.f32.mrb[0].mxu0
    %393 = vmatprep.mubr.f32.mxu0 0.0
    %394 = vmatmul.mubr.f32.gmra.mrb[0].mxu0 %v172
    %v395 = vpop.f32.mrb[0].mxu0
    %v396 = vadd.f32 0.0, %v395
    %v397 = vpop.f32.mrb[0].mxu0
    %398 = vdwg.mxu0
    %vm399 = vcmask 130048
    %v400 = vsel %vm399, %v241, -inf
    %401 = vmax.xlane.f32.xlu0 %v400
    %v402 = vpop.xlane.xlu0 %401
    %v403 = vsel %vm399, %v246, -inf
    %404 = vmax.xlane.f32.xlu0 %v403
    %v405 = vpop.xlane.xlu0 %404
    %v406 = vsel %vm399, %v251, -inf
    %407 = vmax.xlane.f32.xlu0 %v406
    %v408 = vpop.xlane.xlu0 %407
    %v409 = vsel %vm399, %v256, -inf
    %410 = vmax.xlane.f32.xlu0 %v409
    %v411 = vpop.xlane.xlu0 %410
    %v412 = vsel %vm399, %v261, -inf
    %413 = vmax.xlane.f32.xlu0 %v412
    %v414 = vpop.xlane.xlu0 %413
    %v415 = vsel %vm399, %v266, -inf
    %416 = vmax.xlane.f32.xlu0 %v415
    %v417 = vpop.xlane.xlu0 %416
    %v418 = vsel %vm399, %v271, -inf
    %419 = vmax.xlane.f32.xlu0 %v418
    %v420 = vpop.xlane.xlu0 %419
    %v421 = vsel %vm399, %v276, -inf
    %422 = vmax.xlane.f32.xlu0 %v421
    %v423 = vpop.xlane.xlu0 %422
    %v424 = vsel %vm399, %v281, -inf
    %425 = vmax.xlane.f32.xlu0 %v424
    %v426 = vpop.xlane.xlu0 %425
    %v427 = vsel %vm399, %v286, -inf
    %428 = vmax.xlane.f32.xlu0 %v427
    %v429 = vpop.xlane.xlu0 %428
    %v430 = vsel %vm399, %v291, -inf
    %431 = vmax.xlane.f32.xlu0 %v430
    %v432 = vpop.xlane.xlu0 %431
    %v433 = vsel %vm399, %v296, -inf
    %434 = vmax.xlane.f32.xlu0 %v433
    %v435 = vpop.xlane.xlu0 %434
    %v436 = vsel %vm399, %v301, -inf
    %437 = vmax.xlane.f32.xlu0 %v436
    %v438 = vpop.xlane.xlu0 %437
    %v439 = vsel %vm399, %v306, -inf
    %440 = vmax.xlane.f32.xlu0 %v439
    %v441 = vpop.xlane.xlu0 %440
    %v442 = vsel %vm399, %v311, -inf
    %443 = vmax.xlane.f32.xlu0 %v442
    %v444 = vpop.xlane.xlu0 %443
    %v445 = vsel %vm399, %v316, -inf
    %446 = vmax.xlane.f32.xlu0 %v445
    %v447 = vpop.xlane.xlu0 %446
    %v448 = vsub.f32 %v241, %v402
    %v449 = vsub.f32 %v246, %v405
    %v450 = vsub.f32 %v251, %v408
    %v451 = vsub.f32 %v256, %v411
    %v452 = vsub.f32 %v261, %v414
    %v453 = vsub.f32 %v266, %v417
    %v454 = vsub.f32 %v271, %v420
    %v455 = vsub.f32 %v276, %v423
    %v456 = vsub.f32 %v281, %v426
    %v457 = vsub.f32 %v286, %v429
    %v458 = vsub.f32 %v291, %v432
    %v459 = vsub.f32 %v296, %v435
    %v460 = vsub.f32 %v301, %v438
    %v461 = vsub.f32 %v306, %v441
    %v462 = vsub.f32 %v311, %v444
    %v463 = vsub.f32 %v316, %v447
    %v464 = vmul.f32 %v448, 1.442695
    %v465 = vpow.pop %v464
    %v466 = vmul.f32 %v449, 1.442695
    %v467 = vpow.pop %v466
    %v468 = vmul.f32 %v450, 1.442695
    %v469 = vpow.pop %v468
    %v470 = vmul.f32 %v451, 1.442695
    %v471 = vpow.pop %v470
    %v472 = vmul.f32 %v452, 1.442695
    %v473 = vpow.pop %v472
    %v474 = vmul.f32 %v453, 1.442695
    %v475 = vpow.pop %v474
    %v476 = vmul.f32 %v454, 1.442695
    %v477 = vpow.pop %v476
    %v478 = vmul.f32 %v455, 1.442695
    %v479 = vpow.pop %v478
    %v480 = vmul.f32 %v456, 1.442695
    %v481 = vpow.pop %v480
    %v482 = vmul.f32 %v457, 1.442695
    %v483 = vpow.pop %v482
    %v484 = vmul.f32 %v458, 1.442695
    %v485 = vpow.pop %v484
    %v486 = vmul.f32 %v459, 1.442695
    %v487 = vpow.pop %v486
    %v488 = vmul.f32 %v460, 1.442695
    %v489 = vpow.pop %v488
    %v490 = vmul.f32 %v461, 1.442695
    %v491 = vpow.pop %v490
    %v492 = vmul.f32 %v462, 1.442695
    %v493 = vpow.pop %v492
    %v494 = vmul.f32 %v463, 1.442695
    %v495 = vpow.pop %v494
    %v496 = vsel %vm399, %v465, 0.0
    %497 = vadd.xlane.f32.xlu0 %v496
    %v498 = vpop.xlane.xlu0 %497
    %v499 = vsel %vm399, %v467, 0.0
    %500 = vadd.xlane.f32.xlu0 %v499
    %v501 = vpop.xlane.xlu0 %500
    %v502 = vsel %vm399, %v469, 0.0
    %503 = vadd.xlane.f32.xlu0 %v502
    %v504 = vpop.xlane.xlu0 %503
    %v505 = vsel %vm399, %v471, 0.0
    %506 = vadd.xlane.f32.xlu0 %v505
    %v507 = vpop.xlane.xlu0 %506
    %v508 = vsel %vm399, %v473, 0.0
    %509 = vadd.xlane.f32.xlu0 %v508
    %v510 = vpop.xlane.xlu0 %509
    %v511 = vsel %vm399, %v475, 0.0
    %512 = vadd.xlane.f32.xlu0 %v511
    %v513 = vpop.xlane.xlu0 %512
    %v514 = vsel %vm399, %v477, 0.0
    %515 = vadd.xlane.f32.xlu0 %v514
    %v516 = vpop.xlane.xlu0 %515
    %v517 = vsel %vm399, %v479, 0.0
    %518 = vadd.xlane.f32.xlu0 %v517
    %v519 = vpop.xlane.xlu0 %518
    %v520 = vsel %vm399, %v481, 0.0
    %521 = vadd.xlane.f32.xlu0 %v520
    %v522 = vpop.xlane.xlu0 %521
    %v523 = vsel %vm399, %v483, 0.0
    %524 = vadd.xlane.f32.xlu0 %v523
    %v525 = vpop.xlane.xlu0 %524
    %v526 = vsel %vm399, %v485, 0.0
    %527 = vadd.xlane.f32.xlu0 %v526
    %v528 = vpop.xlane.xlu0 %527
    %v529 = vsel %vm399, %v487, 0.0
    %530 = vadd.xlane.f32.xlu0 %v529
    %v531 = vpop.xlane.xlu0 %530
    %v532 = vsel %vm399, %v489, 0.0
    %533 = vadd.xlane.f32.xlu0 %v532
    %v534 = vpop.xlane.xlu0 %533
    %v535 = vsel %vm399, %v491, 0.0
    %536 = vadd.xlane.f32.xlu0 %v535
    %v537 = vpop.xlane.xlu0 %536
    %v538 = vsel %vm399, %v493, 0.0
    %539 = vadd.xlane.f32.xlu0 %v538
    %v540 = vpop.xlane.xlu0 %539
    %v541 = vsel %vm399, %v495, 0.0
    %542 = vadd.xlane.f32.xlu0 %v541
    %v543 = vpop.xlane.xlu0 %542
    %v544 = vmul.f32 %v465, %v321
    %v545 = vmul.f32 %v467, %v326
    %v546 = vmul.f32 %v469, %v331
    %v547 = vmul.f32 %v471, %v336
    %v548 = vmul.f32 %v473, %v341
    %v549 = vmul.f32 %v475, %v346
    %v550 = vmul.f32 %v477, %v351
    %v551 = vmul.f32 %v479, %v356
    %v552 = vmul.f32 %v481, %v361
    %v553 = vmul.f32 %v483, %v366
    %v554 = vmul.f32 %v485, %v371
    %v555 = vmul.f32 %v487, %v376
    %v556 = vmul.f32 %v489, %v381
    %v557 = vmul.f32 %v491, %v386
    %v558 = vmul.f32 %v493, %v391
    %v559 = vmul.f32 %v495, %v396
    %v560 = vsel %vm399, %v544, 0.0
    %561 = vadd.xlane.f32.xlu0 %v560
    %v562 = vpop.xlane.xlu0 %561
    %v563 = vsel %vm399, %v545, 0.0
    %564 = vadd.xlane.f32.xlu0 %v563
    %v565 = vpop.xlane.xlu0 %564
    %v566 = vsel %vm399, %v546, 0.0
    %567 = vadd.xlane.f32.xlu0 %v566
    %v568 = vpop.xlane.xlu0 %567
    %v569 = vsel %vm399, %v547, 0.0
    %570 = vadd.xlane.f32.xlu0 %v569
    %v571 = vpop.xlane.xlu0 %570
    %v572 = vsel %vm399, %v548, 0.0
    %573 = vadd.xlane.f32.xlu0 %v572
    %v574 = vpop.xlane.xlu0 %573
    %v575 = vsel %vm399, %v549, 0.0
    %576 = vadd.xlane.f32.xlu0 %v575
    %v577 = vpop.xlane.xlu0 %576
    %v578 = vsel %vm399, %v550, 0.0
    %579 = vadd.xlane.f32.xlu0 %v578
    %v580 = vpop.xlane.xlu0 %579
    %v581 = vsel %vm399, %v551, 0.0
    %582 = vadd.xlane.f32.xlu0 %v581
    %v583 = vpop.xlane.xlu0 %582
    %v584 = vsel %vm399, %v552, 0.0
    %585 = vadd.xlane.f32.xlu0 %v584
    %v586 = vpop.xlane.xlu0 %585
    %v587 = vsel %vm399, %v553, 0.0
    %588 = vadd.xlane.f32.xlu0 %v587
    %v589 = vpop.xlane.xlu0 %588
    %v590 = vsel %vm399, %v554, 0.0
    %591 = vadd.xlane.f32.xlu0 %v590
    %v592 = vpop.xlane.xlu0 %591
    %v593 = vsel %vm399, %v555, 0.0
    %594 = vadd.xlane.f32.xlu0 %v593
    %v595 = vpop.xlane.xlu0 %594
    %v596 = vsel %vm399, %v556, 0.0
    %597 = vadd.xlane.f32.xlu0 %v596
    %v598 = vpop.xlane.xlu0 %597
    %v599 = vsel %vm399, %v557, 0.0
    %600 = vadd.xlane.f32.xlu0 %v599
    %v601 = vpop.xlane.xlu0 %600
    %v602 = vsel %vm399, %v558, 0.0
    %603 = vadd.xlane.f32.xlu0 %v602
    %v604 = vpop.xlane.xlu0 %603
    %v605 = vsel %vm399, %v559, 0.0
    %606 = vadd.xlane.f32.xlu0 %v605
    %v607 = vpop.xlane.xlu0 %606
    %v608 = vrcp.pop %v498
    %v609 = vrcp.pop %v501
    %v610 = vrcp.pop %v504
    %v611 = vrcp.pop %v507
    %v612 = vrcp.pop %v510
    %v613 = vrcp.pop %v513
    %v614 = vrcp.pop %v516
    %v615 = vrcp.pop %v519
    %v616 = vrcp.pop %v522
    %v617 = vrcp.pop %v525
    %v618 = vrcp.pop %v528
    %v619 = vrcp.pop %v531
    %v620 = vrcp.pop %v534
    %v621 = vrcp.pop %v537
    %v622 = vrcp.pop %v540
    %v623 = vrcp.pop %v543
    %v624 = vmul.f32 %v562, %v608
    %v625 = vmul.f32 %v565, %v609
    %v626 = vmul.f32 %v568, %v610
    %v627 = vmul.f32 %v571, %v611
    %v628 = vmul.f32 %v574, %v612
    %v629 = vmul.f32 %v577, %v613
    %v630 = vmul.f32 %v580, %v614
    %v631 = vmul.f32 %v583, %v615
    %v632 = vmul.f32 %v586, %v616
    %v633 = vmul.f32 %v589, %v617
    %v634 = vmul.f32 %v592, %v618
    %v635 = vmul.f32 %v595, %v619
    %v636 = vmul.f32 %v598, %v620
    %v637 = vmul.f32 %v601, %v621
    %v638 = vmul.f32 %v604, %v622
    %v639 = vmul.f32 %v607, %v623
    %v656 = vlaneseq
    %v657 = vand.u32 %v656, 127
    %v658 = vlaneseq
    %v659 = vshrl.u32 %v658, 7
    %v660 = vsub.s32 %v657, %v659
    %v661 = vrot.slane %v624, %v660
    %v662 = vadd.s32 %v657, 4294967288
    %v663 = vlaneseq
    %v664 = vshrl.u32 %v663, 7
    %v665 = vsub.s32 %v662, %v664
    %v666 = vrot.slane %v625, %v665
    %vm667 = vcmask 130112
    %v668 = vsel %vm667, %v666, %v661
    %v669 = vadd.s32 %v657, 4294967280
    %v670 = vlaneseq
    %v671 = vshrl.u32 %v670, 7
    %v672 = vsub.s32 %v669, %v671
    %v673 = vrot.slane %v626, %v672
    %vm674 = vcmask 195712
    %v675 = vsel %vm674, %v673, %v668
    %v676 = vadd.s32 %v657, 4294967272
    %v677 = vlaneseq
    %v678 = vshrl.u32 %v677, 7
    %v679 = vsub.s32 %v676, %v678
    %v680 = vrot.slane %v627, %v679
    %vm681 = vcmask 261312
    %v682 = vsel %vm681, %v680, %v675
    %v683 = vadd.s32 %v657, 4294967264
    %v684 = vlaneseq
    %v685 = vshrl.u32 %v684, 7
    %v686 = vsub.s32 %v683, %v685
    %v687 = vrot.slane %v628, %v686
    %vm688 = vcmask 326912
    %v689 = vsel %vm688, %v687, %v682
    %v690 = vadd.s32 %v657, 4294967256
    %v691 = vlaneseq
    %v692 = vshrl.u32 %v691, 7
    %v693 = vsub.s32 %v690, %v692
    %v694 = vrot.slane %v629, %v693
    %vm695 = vcmask 392512
    %v696 = vsel %vm695, %v694, %v689
    %v697 = vadd.s32 %v657, 4294967248
    %v698 = vlaneseq
    %v699 = vshrl.u32 %v698, 7
    %v700 = vsub.s32 %v697, %v699
    %v701 = vrot.slane %v630, %v700
    %vm702 = vcmask 458112
    %v703 = vsel %vm702, %v701, %v696
    %v704 = vadd.s32 %v657, 4294967240
    %v705 = vlaneseq
    %v706 = vshrl.u32 %v705, 7
    %v707 = vsub.s32 %v704, %v706
    %v708 = vrot.slane %v631, %v707
    %vm709 = vcmask 523712
    %v710 = vsel %vm709, %v708, %v703
    %v711 = vadd.s32 %v657, 4294967232
    %v712 = vlaneseq
    %v713 = vshrl.u32 %v712, 7
    %v714 = vsub.s32 %v711, %v713
    %v715 = vrot.slane %v632, %v714
    %vm716 = vcmask 589312
    %v717 = vsel %vm716, %v715, %v710
    %v718 = vadd.s32 %v657, 4294967224
    %v719 = vlaneseq
    %v720 = vshrl.u32 %v719, 7
    %v721 = vsub.s32 %v718, %v720
    %v722 = vrot.slane %v633, %v721
    %vm723 = vcmask 654912
    %v724 = vsel %vm723, %v722, %v717
    %v725 = vadd.s32 %v657, 4294967216
    %v726 = vlaneseq
    %v727 = vshrl.u32 %v726, 7
    %v728 = vsub.s32 %v725, %v727
    %v729 = vrot.slane %v634, %v728
    %vm730 = vcmask 720512
    %v731 = vsel %vm730, %v729, %v724
    %v732 = vadd.s32 %v657, 4294967208
    %v733 = vlaneseq
    %v734 = vshrl.u32 %v733, 7
    %v735 = vsub.s32 %v732, %v734
    %v736 = vrot.slane %v635, %v735
    %vm737 = vcmask 786112
    %v738 = vsel %vm737, %v736, %v731
    %v739 = vadd.s32 %v657, 4294967200
    %v740 = vlaneseq
    %v741 = vshrl.u32 %v740, 7
    %v742 = vsub.s32 %v739, %v741
    %v743 = vrot.slane %v636, %v742
    %vm744 = vcmask 851712
    %v745 = vsel %vm744, %v743, %v738
    %v746 = vadd.s32 %v657, 4294967192
    %v747 = vlaneseq
    %v748 = vshrl.u32 %v747, 7
    %v749 = vsub.s32 %v746, %v748
    %v750 = vrot.slane %v637, %v749
    %vm751 = vcmask 917312
    %v752 = vsel %vm751, %v750, %v745
    %v753 = vadd.s32 %v657, 4294967184
    %v754 = vlaneseq
    %v755 = vshrl.u32 %v754, 7
    %v756 = vsub.s32 %v753, %v755
    %v757 = vrot.slane %v638, %v756
    %vm758 = vcmask 982912
    %v759 = vsel %vm758, %v757, %v752
    %v760 = vadd.s32 %v657, 4294967176
    %v761 = vlaneseq
    %v762 = vshrl.u32 %v761, 7
    %v763 = vsub.s32 %v760, %v762
    %v764 = vrot.slane %v639, %v763
    %vm765 = vcmask 1048512
    %v766 = vsel %vm765, %v764, %v759
    %768 = vst [vmem:[#allocation3] sm:$0x1] %v766
    %s769 = scalar_lea.vmem [#allocation2], 32
    %v770 = vld [vmem:[%s769] sm:$0xff]
    %v771 = vld [vmem:[%s769 + $0x8] sm:$0xff]
    %v772 = vld [vmem:[%s769 + $0x10] sm:$0xff]
    %v773 = vld [vmem:[%s769 + $0x18] sm:$0xff]
    %774 = vmatprep.subr.mxu0 0.0
    %775 = vmatpush1.msra.mxu0 %v770
    %776 = vmatprep.subr.mxu0 0.0
    %777 = vmatpush1.msra.mxu0 %v771
    %778 = vmatprep.subr.mxu0 0.0
    %779 = vmatpush1.msra.mxu0 %v772
    %780 = vmatprep.subr.mxu0 0.0
    %781 = vmatpush1.msra.mxu0 %v773
    %782 = vmatprep.subr.mxu0 0.0
    %783 = vmatpush1.msra.mxu0 0.0
    %784 = vmatprep.subr.mxu0 0.0
    %785 = vmatpush1.msra.mxu0 0.0
    %786 = vmatprep.subr.mxu0 0.0
    %787 = vmatpush1.msra.mxu0 0.0
    %788 = vmatprep.subr.mxu0 0.0
    %789 = vmatpush1.msra.mxu0 0.0
    %790 = vmatprep.subr.mxu0 0.0
    %791 = vmatpush1.msra.mxu0 0.0
    %792 = vmatprep.subr.mxu0 0.0
    %793 = vmatpush1.msra.mxu0 0.0
    %794 = vmatprep.subr.mxu0 0.0
    %795 = vmatpush1.msra.mxu0 0.0
    %796 = vmatprep.subr.mxu0 0.0
    %797 = vmatpush1.msra.mxu0 0.0
    %798 = vmatprep.subr.mxu0 0.0
    %799 = vmatpush1.msra.mxu0 0.0
    %800 = vmatprep.subr.mxu0 0.0
    %801 = vmatpush1.msra.mxu0 0.0
    %802 = vmatprep.subr.mxu0 0.0
    %803 = vmatpush1.msra.mxu0 0.0
    %804 = vmatprep.subr.mxu0 0.0
    %805 = vmatpush1.msra.mxu0 0.0
    %806 = vmatprep.subr.mxu0 0.0
    %807 = vmatpush1.msra.mxu0 0.0
    %808 = vmatprep.subr.mxu0 0.0
    %809 = vmatpush1.msra.mxu0 0.0
    %810 = vmatprep.subr.mxu0 0.0
    %811 = vmatpush1.msra.mxu0 0.0
    %812 = vmatprep.subr.mxu0 0.0
    %813 = vmatpush1.msra.mxu0 0.0
    %814 = vmatprep.subr.mxu0 0.0
    %815 = vmatpush1.msra.mxu0 0.0
    %816 = vmatprep.subr.mxu0 0.0
    %817 = vmatpush1.msra.mxu0 0.0
    %818 = vmatprep.subr.mxu0 0.0
    %819 = vmatpush1.msra.mxu0 0.0
    %820 = vmatprep.subr.mxu0 0.0
    %821 = vmatpush1.msra.mxu0 0.0
    %822 = vmatprep.subr.mxu0 0.0
    %823 = vmatpush1.msra.mxu0 0.0
    %824 = vmatprep.subr.mxu0 0.0
    %825 = vmatpush1.msra.mxu0 0.0
    %826 = vmatprep.subr.mxu0 0.0
    %827 = vmatpush1.msra.mxu0 0.0
    %828 = vmatprep.subr.mxu0 0.0
    %829 = vmatpush1.msra.mxu0 0.0
    %830 = vmatprep.subr.mxu0 0.0
    %831 = vmatpush1.msra.mxu0 0.0
    %832 = vmatprep.subr.mxu0 0.0
    %833 = vmatpush1.msra.mxu0 0.0
    %834 = vmatprep.subr.mxu0 0.0
    %835 = vmatpush1.msra.mxu0 0.0
    %836 = vmatprep.subr.mxu0 0.0
    %837 = vmatpush1.msra.mxu0 0.0
    %838 = vmatprep.mubr.f32.mxu0 0.0
    %839 = vmatmul.mubr.f32.gmra.mrb[0].mxu0 %v79
    %v840 = vpop.f32.mrb[0].mxu0
    %v841 = vadd.f32 0.0, %v840
    %v842 = vpop.f32.mrb[0].mxu0
    %843 = vmatprep.mubr.f32.mxu0 0.0
    %844 = vmatmul.mubr.f32.gmra.mrb[0].mxu0 %v82
    %v845 = vpop.f32.mrb[0].mxu0
    %v846 = vadd.f32 0.0, %v845
    %v847 = vpop.f32.mrb[0].mxu0
    %848 = vmatprep.mubr.f32.mxu0 0.0
    %849 = vmatmul.mubr.f32.gmra.mrb[0].mxu0 %v85
    %v850 = vpop.f32.mrb[0].mxu0
    %v851 = vadd.f32 0.0, %v850
    %v852 = vpop.f32.mrb[0].mxu0
    %853 = vmatprep.mubr.f32.mxu0 0.0
    %854 = vmatmul.mubr.f32.gmra.mrb[0].mxu0 %v88
    %v855 = vpop.f32.mrb[0].mxu0
    %v856 = vadd.f32 0.0, %v855
    %v857 = vpop.f32.mrb[0].mxu0
    %858 = vmatprep.mubr.f32.mxu0 0.0
    %859 = vmatmul.mubr.f32.gmra.mrb[0].mxu0 %v91
    %v860 = vpop.f32.mrb[0].mxu0
    %v861 = vadd.f32 0.0, %v860
    %v862 = vpop.f32.mrb[0].mxu0
    %863 = vmatprep.mubr.f32.mxu0 0.0
    %864 = vmatmul.mubr.f32.gmra.mrb[0].mxu0 %v94
    %v865 = vpop.f32.mrb[0].mxu0
    %v866 = vadd.f32 0.0, %v865
    %v867 = vpop.f32.mrb[0].mxu0
    %868 = vmatprep.mubr.f32.mxu0 0.0
    %869 = vmatmul.mubr.f32.gmra.mrb[0].mxu0 %v97
    %v870 = vpop.f32.mrb[0].mxu0
    %v871 = vadd.f32 0.0, %v870
    %v872 = vpop.f32.mrb[0].mxu0
    %873 = vmatprep.mubr.f32.mxu0 0.0
    %874 = vmatmul.mubr.f32.gmra.mrb[0].mxu0 %v100
    %v875 = vpop.f32.mrb[0].mxu0
    %v876 = vadd.f32 0.0, %v875
    %v877 = vpop.f32.mrb[0].mxu0
    %878 = vmatprep.mubr.f32.mxu0 0.0
    %879 = vmatmul.mubr.f32.gmra.mrb[0].mxu0 %v103
    %v880 = vpop.f32.mrb[0].mxu0
    %v881 = vadd.f32 0.0, %v880
    %v882 = vpop.f32.mrb[0].mxu0
    %883 = vmatprep.mubr.f32.mxu0 0.0
    %884 = vmatmul.mubr.f32.gmra.mrb[0].mxu0 %v106
    %v885 = vpop.f32.mrb[0].mxu0
    %v886 = vadd.f32 0.0, %v885
    %v887 = vpop.f32.mrb[0].mxu0
    %888 = vmatprep.mubr.f32.mxu0 0.0
    %889 = vmatmul.mubr.f32.gmra.mrb[0].mxu0 %v109
    %v890 = vpop.f32.mrb[0].mxu0
    %v891 = vadd.f32 0.0, %v890
    %v892 = vpop.f32.mrb[0].mxu0
    %893 = vmatprep.mubr.f32.mxu0 0.0
    %894 = vmatmul.mubr.f32.gmra.mrb[0].mxu0 %v112
    %v895 = vpop.f32.mrb[0].mxu0
    %v896 = vadd.f32 0.0, %v895
    %v897 = vpop.f32.mrb[0].mxu0
    %898 = vmatprep.mubr.f32.mxu0 0.0
    %899 = vmatmul.mubr.f32.gmra.mrb[0].mxu0 %v115
    %v900 = vpop.f32.mrb[0].mxu0
    %v901 = vadd.f32 0.0, %v900
    %v902 = vpop.f32.mrb[0].mxu0
    %903 = vmatprep.mubr.f32.mxu0 0.0
    %904 = vmatmul.mubr.f32.gmra.mrb[0].mxu0 %v118
    %v905 = vpop.f32.mrb[0].mxu0
    %v906 = vadd.f32 0.0, %v905
    %v907 = vpop.f32.mrb[0].mxu0
    %908 = vmatprep.mubr.f32.mxu0 0.0
    %909 = vmatmul.mubr.f32.gmra.mrb[0].mxu0 %v121
    %v910 = vpop.f32.mrb[0].mxu0
    %v911 = vadd.f32 0.0, %v910
    %v912 = vpop.f32.mrb[0].mxu0
    %913 = vmatprep.mubr.f32.mxu0 0.0
    %914 = vmatmul.mubr.f32.gmra.mrb[0].mxu0 %v124
    %v915 = vpop.f32.mrb[0].mxu0
    %v916 = vadd.f32 0.0, %v915
    %v917 = vpop.f32.mrb[0].mxu0
    %918 = vmatprep.mubr.f32.mxu0 0.0
    %919 = vmatmul.mubr.f32.gmra.mrb[0].mxu0 %v127
    %v920 = vpop.f32.mrb[0].mxu0
    %v921 = vadd.f32 0.0, %v920
    %v922 = vpop.f32.mrb[0].mxu0
    %923 = vmatprep.mubr.f32.mxu0 0.0
    %924 = vmatmul.mubr.f32.gmra.mrb[0].mxu0 %v130
    %v925 = vpop.f32.mrb[0].mxu0
    %v926 = vadd.f32 0.0, %v925
    %v927 = vpop.f32.mrb[0].mxu0
    %928 = vmatprep.mubr.f32.mxu0 0.0
    %929 = vmatmul.mubr.f32.gmra.mrb[0].mxu0 %v133
    %v930 = vpop.f32.mrb[0].mxu0
    %v931 = vadd.f32 0.0, %v930
    %v932 = vpop.f32.mrb[0].mxu0
    %933 = vmatprep.mubr.f32.mxu0 0.0
    %934 = vmatmul.mubr.f32.gmra.mrb[0].mxu0 %v136
    %v935 = vpop.f32.mrb[0].mxu0
    %v936 = vadd.f32 0.0, %v935
    %v937 = vpop.f32.mrb[0].mxu0
    %938 = vmatprep.mubr.f32.mxu0 0.0
    %939 = vmatmul.mubr.f32.gmra.mrb[0].mxu0 %v139
    %v940 = vpop.f32.mrb[0].mxu0
    %v941 = vadd.f32 0.0, %v940
    %v942 = vpop.f32.mrb[0].mxu0
    %943 = vmatprep.mubr.f32.mxu0 0.0
    %944 = vmatmul.mubr.f32.gmra.mrb[0].mxu0 %v142
    %v945 = vpop.f32.mrb[0].mxu0
    %v946 = vadd.f32 0.0, %v945
    %v947 = vpop.f32.mrb[0].mxu0
    %948 = vmatprep.mubr.f32.mxu0 0.0
    %949 = vmatmul.mubr.f32.gmra.mrb[0].mxu0 %v145
    %v950 = vpop.f32.mrb[0].mxu0
    %v951 = vadd.f32 0.0, %v950
    %v952 = vpop.f32.mrb[0].mxu0
    %953 = vmatprep.mubr.f32.mxu0 0.0
    %954 = vmatmul.mubr.f32.gmra.mrb[0].mxu0 %v148
    %v955 = vpop.f32.mrb[0].mxu0
    %v956 = vadd.f32 0.0, %v955
    %v957 = vpop.f32.mrb[0].mxu0
    %958 = vmatprep.mubr.f32.mxu0 0.0
    %959 = vmatmul.mubr.f32.gmra.mrb[0].mxu0 %v151
    %v960 = vpop.f32.mrb[0].mxu0
    %v961 = vadd.f32 0.0, %v960
    %v962 = vpop.f32.mrb[0].mxu0
    %963 = vmatprep.mubr.f32.mxu0 0.0
    %964 = vmatmul.mubr.f32.gmra.mrb[0].mxu0 %v154
    %v965 = vpop.f32.mrb[0].mxu0
    %v966 = vadd.f32 0.0, %v965
    %v967 = vpop.f32.mrb[0].mxu0
    %968 = vmatprep.mubr.f32.mxu0 0.0
    %969 = vmatmul.mubr.f32.gmra.mrb[0].mxu0 %v157
    %v970 = vpop.f32.mrb[0].mxu0
    %v971 = vadd.f32 0.0, %v970
    %v972 = vpop.f32.mrb[0].mxu0
    %973 = vmatprep.mubr.f32.mxu0 0.0
    %974 = vmatmul.mubr.f32.gmra.mrb[0].mxu0 %v160
    %v975 = vpop.f32.mrb[0].mxu0
    %v976 = vadd.f32 0.0, %v975
    %v977 = vpop.f32.mrb[0].mxu0
    %978 = vmatprep.mubr.f32.mxu0 0.0
    %979 = vmatmul.mubr.f32.gmra.mrb[0].mxu0 %v163
    %v980 = vpop.f32.mrb[0].mxu0
    %v981 = vadd.f32 0.0, %v980
    %v982 = vpop.f32.mrb[0].mxu0
    %983 = vmatprep.mubr.f32.mxu0 0.0
    %984 = vmatmul.mubr.f32.gmra.mrb[0].mxu0 %v166
    %v985 = vpop.f32.mrb[0].mxu0
    %v986 = vadd.f32 0.0, %v985
    %v987 = vpop.f32.mrb[0].mxu0
    %988 = vmatprep.mubr.f32.mxu0 0.0
    %989 = vmatmul.mubr.f32.gmra.mrb[0].mxu0 %v169
    %v990 = vpop.f32.mrb[0].mxu0
    %v991 = vadd.f32 0.0, %v990
    %v992 = vpop.f32.mrb[0].mxu0
    %993 = vmatprep.mubr.f32.mxu0 0.0
    %994 = vmatmul.mubr.f32.gmra.mrb[0].mxu0 %v172
    %v995 = vpop.f32.mrb[0].mxu0
    %v996 = vadd.f32 0.0, %v995
    %v997 = vpop.f32.mrb[0].mxu0
    %998 = vdwg.mxu0
    %v999 = vsel %vm399, %v841, -inf
    %1000 = vmax.xlane.f32.xlu0 %v999
    %v1001 = vpop.xlane.xlu0 %1000
    %v1002 = vsel %vm399, %v846, -inf
    %1003 = vmax.xlane.f32.xlu0 %v1002
    %v1004 = vpop.xlane.xlu0 %1003
    %v1005 = vsel %vm399, %v851, -inf
    %1006 = vmax.xlane.f32.xlu0 %v1005
    %v1007 = vpop.xlane.xlu0 %1006
    %v1008 = vsel %vm399, %v856, -inf
    %1009 = vmax.xlane.f32.xlu0 %v1008
    %v1010 = vpop.xlane.xlu0 %1009
    %v1011 = vsel %vm399, %v861, -inf
    %1012 = vmax.xlane.f32.xlu0 %v1011
    %v1013 = vpop.xlane.xlu0 %1012
    %v1014 = vsel %vm399, %v866, -inf
    %1015 = vmax.xlane.f32.xlu0 %v1014
    %v1016 = vpop.xlane.xlu0 %1015
    %v1017 = vsel %vm399, %v871, -inf
    %1018 = vmax.xlane.f32.xlu0 %v1017
    %v1019 = vpop.xlane.xlu0 %1018
    %v1020 = vsel %vm399, %v876, -inf
    %1021 = vmax.xlane.f32.xlu0 %v1020
    %v1022 = vpop.xlane.xlu0 %1021
    %v1023 = vsel %vm399, %v881, -inf
    %1024 = vmax.xlane.f32.xlu0 %v1023
    %v1025 = vpop.xlane.xlu0 %1024
    %v1026 = vsel %vm399, %v886, -inf
    %1027 = vmax.xlane.f32.xlu0 %v1026
    %v1028 = vpop.xlane.xlu0 %1027
    %v1029 = vsel %vm399, %v891, -inf
    %1030 = vmax.xlane.f32.xlu0 %v1029
    %v1031 = vpop.xlane.xlu0 %1030
    %v1032 = vsel %vm399, %v896, -inf
    %1033 = vmax.xlane.f32.xlu0 %v1032
    %v1034 = vpop.xlane.xlu0 %1033
    %v1035 = vsel %vm399, %v901, -inf
    %1036 = vmax.xlane.f32.xlu0 %v1035
    %v1037 = vpop.xlane.xlu0 %1036
    %v1038 = vsel %vm399, %v906, -inf
    %1039 = vmax.xlane.f32.xlu0 %v1038
    %v1040 = vpop.xlane.xlu0 %1039
    %v1041 = vsel %vm399, %v911, -inf
    %1042 = vmax.xlane.f32.xlu0 %v1041
    %v1043 = vpop.xlane.xlu0 %1042
    %v1044 = vsel %vm399, %v916, -inf
    %1045 = vmax.xlane.f32.xlu0 %v1044
    %v1046 = vpop.xlane.xlu0 %1045
    %v1047 = vsub.f32 %v841, %v1001
    %v1048 = vsub.f32 %v846, %v1004
    %v1049 = vsub.f32 %v851, %v1007
    %v1050 = vsub.f32 %v856, %v1010
    %v1051 = vsub.f32 %v861, %v1013
    %v1052 = vsub.f32 %v866, %v1016
    %v1053 = vsub.f32 %v871, %v1019
    %v1054 = vsub.f32 %v876, %v1022
    %v1055 = vsub.f32 %v881, %v1025
    %v1056 = vsub.f32 %v886, %v1028
    %v1057 = vsub.f32 %v891, %v1031
    %v1058 = vsub.f32 %v896, %v1034
    %v1059 = vsub.f32 %v901, %v1037
    %v1060 = vsub.f32 %v906, %v1040
    %v1061 = vsub.f32 %v911, %v1043
    %v1062 = vsub.f32 %v916, %v1046
    %v1063 = vmul.f32 %v1047, 1.442695
    %v1064 = vpow.pop %v1063
    %v1065 = vmul.f32 %v1048, 1.442695
    %v1066 = vpow.pop %v1065
    %v1067 = vmul.f32 %v1049, 1.442695
    %v1068 = vpow.pop %v1067
    %v1069 = vmul.f32 %v1050, 1.442695
    %v1070 = vpow.pop %v1069
    %v1071 = vmul.f32 %v1051, 1.442695
    %v1072 = vpow.pop %v1071
    %v1073 = vmul.f32 %v1052, 1.442695
    %v1074 = vpow.pop %v1073
    %v1075 = vmul.f32 %v1053, 1.442695
    %v1076 = vpow.pop %v1075
    %v1077 = vmul.f32 %v1054, 1.442695
    %v1078 = vpow.pop %v1077
    %v1079 = vmul.f32 %v1055, 1.442695
    %v1080 = vpow.pop %v1079
    %v1081 = vmul.f32 %v1056, 1.442695
    %v1082 = vpow.pop %v1081
    %v1083 = vmul.f32 %v1057, 1.442695
    %v1084 = vpow.pop %v1083
    %v1085 = vmul.f32 %v1058, 1.442695
    %v1086 = vpow.pop %v1085
    %v1087 = vmul.f32 %v1059, 1.442695
    %v1088 = vpow.pop %v1087
    %v1089 = vmul.f32 %v1060, 1.442695
    %v1090 = vpow.pop %v1089
    %v1091 = vmul.f32 %v1061, 1.442695
    %v1092 = vpow.pop %v1091
    %v1093 = vmul.f32 %v1062, 1.442695
    %v1094 = vpow.pop %v1093
    %v1095 = vsel %vm399, %v1064, 0.0
    %1096 = vadd.xlane.f32.xlu0 %v1095
    %v1097 = vpop.xlane.xlu0 %1096
    %v1098 = vsel %vm399, %v1066, 0.0
    %1099 = vadd.xlane.f32.xlu0 %v1098
    %v1100 = vpop.xlane.xlu0 %1099
    %v1101 = vsel %vm399, %v1068, 0.0
    %1102 = vadd.xlane.f32.xlu0 %v1101
    %v1103 = vpop.xlane.xlu0 %1102
    %v1104 = vsel %vm399, %v1070, 0.0
    %1105 = vadd.xlane.f32.xlu0 %v1104
    %v1106 = vpop.xlane.xlu0 %1105
    %v1107 = vsel %vm399, %v1072, 0.0
    %1108 = vadd.xlane.f32.xlu0 %v1107
    %v1109 = vpop.xlane.xlu0 %1108
    %v1110 = vsel %vm399, %v1074, 0.0
    %1111 = vadd.xlane.f32.xlu0 %v1110
    %v1112 = vpop.xlane.xlu0 %1111
    %v1113 = vsel %vm399, %v1076, 0.0
    %1114 = vadd.xlane.f32.xlu0 %v1113
    %v1115 = vpop.xlane.xlu0 %1114
    %v1116 = vsel %vm399, %v1078, 0.0
    %1117 = vadd.xlane.f32.xlu0 %v1116
    %v1118 = vpop.xlane.xlu0 %1117
    %v1119 = vsel %vm399, %v1080, 0.0
    %1120 = vadd.xlane.f32.xlu0 %v1119
    %v1121 = vpop.xlane.xlu0 %1120
    %v1122 = vsel %vm399, %v1082, 0.0
    %1123 = vadd.xlane.f32.xlu0 %v1122
    %v1124 = vpop.xlane.xlu0 %1123
    %v1125 = vsel %vm399, %v1084, 0.0
    %1126 = vadd.xlane.f32.xlu0 %v1125
    %v1127 = vpop.xlane.xlu0 %1126
    %v1128 = vsel %vm399, %v1086, 0.0
    %1129 = vadd.xlane.f32.xlu0 %v1128
    %v1130 = vpop.xlane.xlu0 %1129
    %v1131 = vsel %vm399, %v1088, 0.0
    %1132 = vadd.xlane.f32.xlu0 %v1131
    %v1133 = vpop.xlane.xlu0 %1132
    %v1134 = vsel %vm399, %v1090, 0.0
    %1135 = vadd.xlane.f32.xlu0 %v1134
    %v1136 = vpop.xlane.xlu0 %1135
    %v1137 = vsel %vm399, %v1092, 0.0
    %1138 = vadd.xlane.f32.xlu0 %v1137
    %v1139 = vpop.xlane.xlu0 %1138
    %v1140 = vsel %vm399, %v1094, 0.0
    %1141 = vadd.xlane.f32.xlu0 %v1140
    %v1142 = vpop.xlane.xlu0 %1141
    %v1143 = vmul.f32 %v1064, %v921
    %v1144 = vmul.f32 %v1066, %v926
    %v1145 = vmul.f32 %v1068, %v931
    %v1146 = vmul.f32 %v1070, %v936
    %v1147 = vmul.f32 %v1072, %v941
    %v1148 = vmul.f32 %v1074, %v946
    %v1149 = vmul.f32 %v1076, %v951
    %v1150 = vmul.f32 %v1078, %v956
    %v1151 = vmul.f32 %v1080, %v961
    %v1152 = vmul.f32 %v1082, %v966
    %v1153 = vmul.f32 %v1084, %v971
    %v1154 = vmul.f32 %v1086, %v976
    %v1155 = vmul.f32 %v1088, %v981
    %v1156 = vmul.f32 %v1090, %v986
    %v1157 = vmul.f32 %v1092, %v991
    %v1158 = vmul.f32 %v1094, %v996
    %v1159 = vsel %vm399, %v1143, 0.0
    %1160 = vadd.xlane.f32.xlu0 %v1159
    %v1161 = vpop.xlane.xlu0 %1160
    %v1162 = vsel %vm399, %v1144, 0.0
    %1163 = vadd.xlane.f32.xlu0 %v1162
    %v1164 = vpop.xlane.xlu0 %1163
    %v1165 = vsel %vm399, %v1145, 0.0
    %1166 = vadd.xlane.f32.xlu0 %v1165
    %v1167 = vpop.xlane.xlu0 %1166
    %v1168 = vsel %vm399, %v1146, 0.0
    %1169 = vadd.xlane.f32.xlu0 %v1168
    %v1170 = vpop.xlane.xlu0 %1169
    %v1171 = vsel %vm399, %v1147, 0.0
    %1172 = vadd.xlane.f32.xlu0 %v1171
    %v1173 = vpop.xlane.xlu0 %1172
    %v1174 = vsel %vm399, %v1148, 0.0
    %1175 = vadd.xlane.f32.xlu0 %v1174
    %v1176 = vpop.xlane.xlu0 %1175
    %v1177 = vsel %vm399, %v1149, 0.0
    %1178 = vadd.xlane.f32.xlu0 %v1177
    %v1179 = vpop.xlane.xlu0 %1178
    %v1180 = vsel %vm399, %v1150, 0.0
    %1181 = vadd.xlane.f32.xlu0 %v1180
    %v1182 = vpop.xlane.xlu0 %1181
    %v1183 = vsel %vm399, %v1151, 0.0
    %1184 = vadd.xlane.f32.xlu0 %v1183
    %v1185 = vpop.xlane.xlu0 %1184
    %v1186 = vsel %vm399, %v1152, 0.0
    %1187 = vadd.xlane.f32.xlu0 %v1186
    %v1188 = vpop.xlane.xlu0 %1187
    %v1189 = vsel %vm399, %v1153, 0.0
    %1190 = vadd.xlane.f32.xlu0 %v1189
    %v1191 = vpop.xlane.xlu0 %1190
    %v1192 = vsel %vm399, %v1154, 0.0
    %1193 = vadd.xlane.f32.xlu0 %v1192
    %v1194 = vpop.xlane.xlu0 %1193
    %v1195 = vsel %vm399, %v1155, 0.0
    %1196 = vadd.xlane.f32.xlu0 %v1195
    %v1197 = vpop.xlane.xlu0 %1196
    %v1198 = vsel %vm399, %v1156, 0.0
    %1199 = vadd.xlane.f32.xlu0 %v1198
    %v1200 = vpop.xlane.xlu0 %1199
    %v1201 = vsel %vm399, %v1157, 0.0
    %1202 = vadd.xlane.f32.xlu0 %v1201
    %v1203 = vpop.xlane.xlu0 %1202
    %v1204 = vsel %vm399, %v1158, 0.0
    %1205 = vadd.xlane.f32.xlu0 %v1204
    %v1206 = vpop.xlane.xlu0 %1205
    %v1207 = vrcp.pop %v1097
    %v1208 = vrcp.pop %v1100
    %v1209 = vrcp.pop %v1103
    %v1210 = vrcp.pop %v1106
    %v1211 = vrcp.pop %v1109
    %v1212 = vrcp.pop %v1112
    %v1213 = vrcp.pop %v1115
    %v1214 = vrcp.pop %v1118
    %v1215 = vrcp.pop %v1121
    %v1216 = vrcp.pop %v1124
    %v1217 = vrcp.pop %v1127
    %v1218 = vrcp.pop %v1130
    %v1219 = vrcp.pop %v1133
    %v1220 = vrcp.pop %v1136
    %v1221 = vrcp.pop %v1139
    %v1222 = vrcp.pop %v1142
    %v1223 = vmul.f32 %v1161, %v1207
    %v1224 = vmul.f32 %v1164, %v1208
    %v1225 = vmul.f32 %v1167, %v1209
    %v1226 = vmul.f32 %v1170, %v1210
    %v1227 = vmul.f32 %v1173, %v1211
    %v1228 = vmul.f32 %v1176, %v1212
    %v1229 = vmul.f32 %v1179, %v1213
    %v1230 = vmul.f32 %v1182, %v1214
    %v1231 = vmul.f32 %v1185, %v1215
    %v1232 = vmul.f32 %v1188, %v1216
    %v1233 = vmul.f32 %v1191, %v1217
    %v1234 = vmul.f32 %v1194, %v1218
    %v1235 = vmul.f32 %v1197, %v1219
    %v1236 = vmul.f32 %v1200, %v1220
    %v1237 = vmul.f32 %v1203, %v1221
    %v1238 = vmul.f32 %v1206, %v1222
    %v1255 = vlaneseq
    %v1256 = vshrl.u32 %v1255, 7
    %v1257 = vsub.s32 %v657, %v1256
    %v1258 = vrot.slane %v1223, %v1257
    %v1259 = vlaneseq
    %v1260 = vshrl.u32 %v1259, 7
    %v1261 = vsub.s32 %v662, %v1260
    %v1262 = vrot.slane %v1224, %v1261
    %v1263 = vsel %vm667, %v1262, %v1258
    %v1264 = vlaneseq
    %v1265 = vshrl.u32 %v1264, 7
    %v1266 = vsub.s32 %v669, %v1265
    %v1267 = vrot.slane %v1225, %v1266
    %v1268 = vsel %vm674, %v1267, %v1263
    %v1269 = vlaneseq
    %v1270 = vshrl.u32 %v1269, 7
    %v1271 = vsub.s32 %v676, %v1270
    %v1272 = vrot.slane %v1226, %v1271
    %v1273 = vsel %vm681, %v1272, %v1268
    %v1274 = vlaneseq
    %v1275 = vshrl.u32 %v1274, 7
    %v1276 = vsub.s32 %v683, %v1275
    %v1277 = vrot.slane %v1227, %v1276
    %v1278 = vsel %vm688, %v1277, %v1273
    %v1279 = vlaneseq
    %v1280 = vshrl.u32 %v1279, 7
    %v1281 = vsub.s32 %v690, %v1280
    %v1282 = vrot.slane %v1228, %v1281
    %v1283 = vsel %vm695, %v1282, %v1278
    %v1284 = vlaneseq
    %v1285 = vshrl.u32 %v1284, 7
    %v1286 = vsub.s32 %v697, %v1285
    %v1287 = vrot.slane %v1229, %v1286
    %v1288 = vsel %vm702, %v1287, %v1283
    %v1289 = vlaneseq
    %v1290 = vshrl.u32 %v1289, 7
    %v1291 = vsub.s32 %v704, %v1290
    %v1292 = vrot.slane %v1230, %v1291
    %v1293 = vsel %vm709, %v1292, %v1288
    %v1294 = vlaneseq
    %v1295 = vshrl.u32 %v1294, 7
    %v1296 = vsub.s32 %v711, %v1295
    %v1297 = vrot.slane %v1231, %v1296
    %v1298 = vsel %vm716, %v1297, %v1293
    %v1299 = vlaneseq
    %v1300 = vshrl.u32 %v1299, 7
    %v1301 = vsub.s32 %v718, %v1300
    %v1302 = vrot.slane %v1232, %v1301
    %v1303 = vsel %vm723, %v1302, %v1298
    %v1304 = vlaneseq
    %v1305 = vshrl.u32 %v1304, 7
    %v1306 = vsub.s32 %v725, %v1305
    %v1307 = vrot.slane %v1233, %v1306
    %v1308 = vsel %vm730, %v1307, %v1303
    %v1309 = vlaneseq
    %v1310 = vshrl.u32 %v1309, 7
    %v1311 = vsub.s32 %v732, %v1310
    %v1312 = vrot.slane %v1234, %v1311
    %v1313 = vsel %vm737, %v1312, %v1308
    %v1314 = vlaneseq
    %v1315 = vshrl.u32 %v1314, 7
    %v1316 = vsub.s32 %v739, %v1315
    %v1317 = vrot.slane %v1235, %v1316
    %v1318 = vsel %vm744, %v1317, %v1313
    %v1319 = vlaneseq
    %v1320 = vshrl.u32 %v1319, 7
    %v1321 = vsub.s32 %v746, %v1320
    %v1322 = vrot.slane %v1236, %v1321
    %v1323 = vsel %vm751, %v1322, %v1318
    %v1324 = vlaneseq
    %v1325 = vshrl.u32 %v1324, 7
    %v1326 = vsub.s32 %v753, %v1325
    %v1327 = vrot.slane %v1237, %v1326
    %v1328 = vsel %vm758, %v1327, %v1323
    %v1329 = vlaneseq
    %v1330 = vshrl.u32 %v1329, 7
    %v1331 = vsub.s32 %v760, %v1330
    %v1332 = vrot.slane %v1238, %v1331
    %v1333 = vsel %vm765, %v1332, %v1328
    %1335 = vst [vmem:[#allocation3 + $0x1] sm:$0x1] %v1333
    // Predicated region
    $region14: #{tpu_custom_call.1} parent=1 // pred_check
      _
    $region15: #{tpu_custom_call.1} parent=1 // pred_check_branch
      %1337 = sbr.rel (0) target = $region17
    $region16: #{tpu_custom_call.1} parent=1 // pred_region
      %s1339 = ssub.s32 32, 32
      %1340 = vsyncadd [#allocation4], %s1339
      %s1342 = sshll.u32 [#allocation3], 4
      %s1343 = int_to_ptr.vmem [resolvable:$true] %s1342
      %1345 = dma.vmem_to_hbm [thread:$0]  %s1343, 32, %s2, [#allocation4]
    $region17: #{tpu_custom_call.1} parent=1 // pred_fallthru
      _
    // Predicated region
    $region18: #{tpu_custom_call.1} parent=1 // pred_check
      _
    $region19: #{tpu_custom_call.1} parent=1 // pred_check_branch
      %1347 = sbr.rel (0) target = $region21
    $region20: #{tpu_custom_call.1} parent=1 // pred_region
      %1348 = dma.done [#allocation4], 32
    $region21: #{tpu_custom_call.1} parent=1 // pred_fallthru
      _
    %1349 = vsyncpa [#allocation4], 1

</llo_original>
